<compile_context>
chip_gen: v7x
topology: tpu7x:2x2x1
jax: 0.10.0
libtpu: 0.0.40
codegen_flags: <defaults>
</compile_context>

<pallas_src>
import jax
import jax.numpy as jnp
from jax.experimental import pallas as pl
from jax.experimental.pallas import tpu as pltpu

IN_FEATURES = 1216
HIDDEN = 64
LANES = 128
SUBLANES = 8


def actor_kernel(x_ref, w1_ref, b1_ref, w2_ref, b2_ref, o_ref):
    # Cast the f32 x tile to bf16 in-register (VPU cast hides under the DMA),
    # so the wrapper never does a separate HBM pass over x.
    x = x_ref[...].astype(jnp.bfloat16)
    # First linear: (TB, 1216)bf16 @ (1216, 64)bf16 -> f32 accumulation on MXU.
    h = jnp.dot(x, w1_ref[...], preferred_element_type=jnp.float32)
    # Bias + Dropout(0.5) in eval mode (identity) + ReLU, on the VPU in f32.
    h = jnp.maximum(h + b1_ref[...], 0.0)
    # Second linear: (TB, 64)bf16 @ (64, A_pad)bf16 + (1, A_pad), f32 accum.
    out = jnp.dot(h.astype(w2_ref.dtype), w2_ref[...],
                  preferred_element_type=jnp.float32)
    out = out + b2_ref[...]
    # Lane-dense (multiple-of-128) bf16 store.
    o_ref[...] = out.astype(o_ref.dtype)


def prepare_actor_params(w1, b1, w2, b2, *, param_dtype=jnp.bfloat16):
    """One-time parameter prep (cast + lane padding). Call once, reuse."""
    assert w1.shape == (IN_FEATURES, HIDDEN)
    A = w2.shape[1]
    A_pad = pl.cdiv(A, LANES) * LANES
    w1c = w1.astype(param_dtype)
    b1c = b1.reshape(1, HIDDEN).astype(jnp.float32)
    w2p = jnp.pad(w2, ((0, 0), (0, A_pad - A))).astype(param_dtype)
    b2p = jnp.pad(b2.reshape(1, A).astype(jnp.float32),
                  ((0, 0), (0, A_pad - A)))
    return (w1c, b1c, w2p, b2p), A


def _pick_batch_tile(B, block_b):
    """Batch tile: multiple of 8 sublanes, capped at block_b, and (when the
    batch is big enough) sized so the grid has >=2 steps, letting "parallel"
    semantics shard batch tiles across v7x's two TensorCores."""
    full = pl.cdiv(B, SUBLANES) * SUBLANES
    if B >= 2 * SUBLANES:
        target = pl.cdiv(pl.cdiv(B, 2), SUBLANES) * SUBLANES
    else:
        target = full
    return min(block_b, target)


def actor_forward(x, prepped_params, num_action, *, block_b=1024):
    """Forward pass of Actor.  x: (B, 1216) f32.  Returns (B, A) f32.

    `prepped_params` comes from prepare_actor_params (done once, reused)."""
    w1c, b1c, w2p, b2p = prepped_params
    B, f_in = x.shape
    assert f_in == IN_FEATURES
    A = num_action
    A_pad = w2p.shape[1]

    TB = _pick_batch_tile(B, block_b)
    B_pad = pl.cdiv(B, TB) * TB

    # Zero-pad x along batch only when the tile doesn't divide B; keeps all
    # kernel-visible rows defined. (Pallas ragged-edge masking could drop this
    # copy, but padded rows would then read unspecified data.)
    xp = jnp.pad(x, ((0, B_pad - B), (0, 0))) if B_pad != B else x

    grid = (B_pad // TB,)

    # Advisory cost hint for XLA's scheduler (kernel itself is HBM bound).
    flops = 2 * B_pad * (IN_FEATURES * HIDDEN + HIDDEN * A_pad)
    bytes_accessed = (B_pad * IN_FEATURES * 4            # x (f32 in)
                      + IN_FEATURES * HIDDEN * 2         # w1 (bf16)
                      + HIDDEN * 4                       # b1
                      + HIDDEN * A_pad * 2               # w2 (bf16)
                      + A_pad * 4                        # b2
                      + B_pad * A_pad * 2)               # out (bf16)
    cost = pl.CostEstimate(flops=flops, transcendentals=0,
                           bytes_accessed=bytes_accessed)

    out = pl.pallas_call(
        actor_kernel,
        out_shape=jax.ShapeDtypeStruct((B_pad, A_pad), jnp.bfloat16),
        grid=grid,
        in_specs=[
            # x: blocked along batch (f32), pipelined/double-buffered.
            pl.BlockSpec((TB, IN_FEATURES), lambda i: (i, 0)),
            # Weights / biases: constant index_map -> stay VMEM-resident.
            pl.BlockSpec((IN_FEATURES, HIDDEN), lambda i: (0, 0)),
            pl.BlockSpec((1, HIDDEN), lambda i: (0, 0)),
            pl.BlockSpec((HIDDEN, A_pad), lambda i: (0, 0)),
            pl.BlockSpec((1, A_pad), lambda i: (0, 0)),
        ],
        out_specs=pl.BlockSpec((TB, A_pad), lambda i: (i, 0)),
        compiler_params=pltpu.CompilerParams(
            # Batch tiles are independent -> megacore sharding on v7x.
            dimension_semantics=("parallel",),
            # Explicit scoped-VMEM budget: ~10 MB of double-buffered f32 x
            # tiles at TB=1024 plus <1 MB of weights/outputs fits everywhere.
            vmem_limit_bytes=32 * 1024 * 1024,
        ),
        cost_estimate=cost,
    )(xp, w1c, b1c, w2p, b2p)

    # Drop batch padding and the zero output columns; cast back to f32.
    return out[:B, :A].astype(jnp.float32)


def init_params(key, num_action):
    # Deterministic init mimicking PyTorch Linear default:
    # U(-1/sqrt(fan_in), 1/sqrt(fan_in)) for both weight and bias.
    k1, k2, k3, k4 = jax.random.split(key, 4)
    bound1 = 1.0 / jnp.sqrt(jnp.float32(IN_FEATURES))
    bound2 = 1.0 / jnp.sqrt(jnp.float32(HIDDEN))
    w1 = jax.random.uniform(k1, (IN_FEATURES, HIDDEN), jnp.float32,
                            -bound1, bound1)
    b1 = jax.random.uniform(k2, (1, HIDDEN), jnp.float32, -bound1, bound1)
    w2 = jax.random.uniform(k3, (HIDDEN, num_action), jnp.float32,
                            -bound2, bound2)
    b2 = jax.random.uniform(k4, (1, num_action), jnp.float32, -bound2, bound2)
    return w1, b1, w2, b2


def _reference(x, w1, b1, w2, b2):
    # Pure-JAX f32 reference (eval-mode dropout == identity).
    return jnp.maximum(x @ w1 + b1, 0.0) @ w2 + b2


if __name__ == "__main__":
    num_action = 4

    key = jax.random.PRNGKey(0)
    k_x, k_p, k_x2 = jax.random.split(key, 3)
    w1, b1, w2, b2 = init_params(k_p, num_action)

    # One-time parameter prep (bf16 cast + lane padding), reused across calls.
    prepped, A = prepare_actor_params(w1, b1, w2, b2)
    assert A == num_action

    # Small batch (matches the RL-actor use case): exercises batch padding to
    # the 8-sublane tile and the 4 -> 128 lane padding of the output.
    batch = 2
    x = jax.random.normal(k_x, (batch, IN_FEATURES), jnp.float32)
    out = jax.block_until_ready(actor_forward(x, prepped, num_action))
    ref = _reference(x, w1, b1, w2, b2)
    assert out.shape == (batch, num_action)
    # bf16 weights/activations/output with f32 accumulation -> loose tolerance.
    assert jnp.allclose(out, ref, atol=3e-2, rtol=3e-2)

    # A modest multi-tile batch to exercise the grid / pipelining path
    # (TB=128 -> grid of 3 tiles with batch padding).
    batch2 = 260
    x2 = jax.random.normal(k_x2, (batch2, IN_FEATURES), jnp.float32)
    out2 = jax.block_until_ready(
        actor_forward(x2, prepped, num_action, block_b=128))
    ref2 = _reference(x2, w1, b1, w2, b2)
    assert out2.shape == (batch2, num_action)
    assert jnp.allclose(out2, ref2, atol=3e-2, rtol=3e-2)

    print("KERNEL_OK")
</pallas_src>

<mosaic_0001>
module attributes {stable_mosaic.version = 11 : i64} {
  func.func @actor_kernel(%arg0: i32, %arg1: memref<8x1216xf32, #tpu.memory_space<vmem>>, %arg2: memref<1216x64xbf16, #tpu.memory_space<vmem>>, %arg3: memref<1x64xf32, #tpu.memory_space<vmem>>, %arg4: memref<64x128xbf16, #tpu.memory_space<vmem>>, %arg5: memref<1x128xf32, #tpu.memory_space<vmem>>, %arg6: memref<8x128xbf16, #tpu.memory_space<vmem>>) attributes {dimension_semantics = [#tpu.dimension_semantics<parallel>], iteration_bounds = array<i64: 1>, scalar_prefetch = 0 : i64, scratch_operands = 0 : i64, tpu.core_type = #tpu.core_type<tc>, window_params = [{transform_indices = @transform_0, window_bounds = array<i64: 8, 1216>}, {pipeline_mode = #tpu.pipeline_mode<synchronous>, transform_indices = @transform_1, window_bounds = array<i64: 1216, 64>}, {pipeline_mode = #tpu.pipeline_mode<synchronous>, transform_indices = @transform_2, window_bounds = array<i64: 1, 64>}, {pipeline_mode = #tpu.pipeline_mode<synchronous>, transform_indices = @transform_3, window_bounds = array<i64: 64, 128>}, {pipeline_mode = #tpu.pipeline_mode<synchronous>, transform_indices = @transform_4, window_bounds = array<i64: 1, 128>}, {transform_indices = @transform_5, window_bounds = array<i64: 8, 128>}]} {
    %c0 = arith.constant 0 : index
    %c0_0 = arith.constant 0 : index
    %0 = vector.load %arg1[%c0, %c0_0] : memref<8x1216xf32, #tpu.memory_space<vmem>>, vector<8x1216xf32>
    %1 = arith.truncf %0 : vector<8x1216xf32> to vector<8x1216xbf16>
    %c0_1 = arith.constant 0 : index
    %c0_2 = arith.constant 0 : index
    %2 = vector.load %arg2[%c0_1, %c0_2] : memref<1216x64xbf16, #tpu.memory_space<vmem>>, vector<1216x64xbf16>
    %cst = arith.constant dense<0.000000e+00> : vector<8x64xf32>
    %3 = tpu.matmul %1, %2, %cst {dimension_numbers = #tpu.dot_dimension_numbers<[1], [0], [0], [1], [0, 0, 1, 1], [], []>} : vector<8x1216xbf16>, vector<1216x64xbf16>, vector<8x64xf32> -> vector<8x64xf32>
    %c0_3 = arith.constant 0 : index
    %c0_4 = arith.constant 0 : index
    %4 = vector.load %arg3[%c0_3, %c0_4] : memref<1x64xf32, #tpu.memory_space<vmem>>, vector<1x64xf32>
    %5 = vector.broadcast %4 : vector<1x64xf32> to vector<8x64xf32>
    %6 = arith.addf %3, %5 : vector<8x64xf32>
    %cst_5 = arith.constant 0.000000e+00 : f32
    %7 = vector.broadcast %cst_5 : f32 to vector<8x64xf32>
    %8 = arith.maximumf %6, %7 : vector<8x64xf32>
    %9 = arith.truncf %8 : vector<8x64xf32> to vector<8x64xbf16>
    %c0_6 = arith.constant 0 : index
    %c0_7 = arith.constant 0 : index
    %10 = vector.load %arg4[%c0_6, %c0_7] : memref<64x128xbf16, #tpu.memory_space<vmem>>, vector<64x128xbf16>
    %cst_8 = arith.constant dense<0.000000e+00> : vector<8x128xf32>
    %11 = tpu.matmul %9, %10, %cst_8 {dimension_numbers = #tpu.dot_dimension_numbers<[1], [0], [0], [1], [0, 0, 1, 1], [], []>} : vector<8x64xbf16>, vector<64x128xbf16>, vector<8x128xf32> -> vector<8x128xf32>
    %c0_9 = arith.constant 0 : index
    %c0_10 = arith.constant 0 : index
    %12 = vector.load %arg5[%c0_9, %c0_10] : memref<1x128xf32, #tpu.memory_space<vmem>>, vector<1x128xf32>
    %13 = vector.broadcast %12 : vector<1x128xf32> to vector<8x128xf32>
    %14 = arith.addf %11, %13 : vector<8x128xf32>
    %15 = arith.truncf %14 : vector<8x128xf32> to vector<8x128xbf16>
    %c0_11 = arith.constant 0 : index
    %c0_12 = arith.constant 0 : index
    %16 = vector.load %arg6[%c0_11, %c0_12] : memref<8x128xbf16, #tpu.memory_space<vmem>>, vector<8x128xbf16>
    tpu.vector_store %arg6[%c0_11, %c0_12], %15 {strides = array<i32>} : memref<8x128xbf16, #tpu.memory_space<vmem>>, vector<8x128xbf16>,
    return
  }
  func.func @transform_0(%arg0: i32) -> (i32, i32) {
    %c0_i32 = arith.constant 0 : i32
    %c0_i32_0 = arith.constant 0 : i32
    return %arg0, %c0_i32 : i32, i32
  }
  func.func @transform_1(%arg0: i32) -> (i32, i32) {
    %c0_i32 = arith.constant 0 : i32
    %c0_i32_0 = arith.constant 0 : i32
    %c0_i32_1 = arith.constant 0 : i32
    return %c0_i32, %c0_i32_0 : i32, i32
  }
  func.func @transform_2(%arg0: i32) -> (i32, i32) {
    %c0_i32 = arith.constant 0 : i32
    %c0_i32_0 = arith.constant 0 : i32
    %c0_i32_1 = arith.constant 0 : i32
    return %c0_i32, %c0_i32_0 : i32, i32
  }
  func.func @transform_3(%arg0: i32) -> (i32, i32) {
    %c0_i32 = arith.constant 0 : i32
    %c0_i32_0 = arith.constant 0 : i32
    %c0_i32_1 = arith.constant 0 : i32
    return %c0_i32, %c0_i32_0 : i32, i32
  }
  func.func @transform_4(%arg0: i32) -> (i32, i32) {
    %c0_i32 = arith.constant 0 : i32
    %c0_i32_0 = arith.constant 0 : i32
    %c0_i32_1 = arith.constant 0 : i32
    return %c0_i32, %c0_i32_0 : i32, i32
  }
  func.func @transform_5(%arg0: i32) -> (i32, i32) {
    %c0_i32 = arith.constant 0 : i32
    %c0_i32_0 = arith.constant 0 : i32
    return %arg0, %c0_i32 : i32, i32
  }
}

</mosaic_0001>

<llo_original>
// kernel: tpu_custom_call.1
$region0: #{tpu_custom_call.1}
  #allocation0 [shape = 'u32[]', space=smem, size = 0x4, offset = 0x4, fixed_abs, tag = 'smem constant byte address 0x4 - core index']
  #allocation1 [shape = 'u32[144,128]{1,0:T(1,128)}', space=vmem, size = 0x12000, scoped, tag = 'internal scratch']
  %s0 = inlined_call_operand.vmem [shape: f32[8,1216], index: 0, kind: input, shape index: {}]
  %s1 = inlined_call_operand.vmem [shape: bf16[1216,64], index: 1, kind: input, shape index: {}]
  %s2 = inlined_call_operand.vmem [shape: f32[1,64], index: 2, kind: input, shape index: {}]
  %s3 = inlined_call_operand.vmem [shape: bf16[64,128], index: 3, kind: input, shape index: {}]
  %s4 = inlined_call_operand.vmem [shape: f32[1,128], index: 4, kind: input, shape index: {}]
  %s5 = inlined_call_operand.hbm [shape: bf16[8,128], index: 5, kind: output, shape index: {}]
  %s6 = sld [smem:[#allocation0]]
  $region30: #{tpu_custom_call.1} parent=0
    _
  %s8 = ssub.s32 1, %s6
  %s9 = scalar_select 0, %s8, %s6
  $region1: #{tpu_custom_call.1} parent=0
    #allocation2 [shape = 'u8[2048]{0}', space=vmem, size = 0x800, scoped, tag = 'output window, operand 0, single buffered']
    #allocation3 [shape = 's32[1]{0}', space=sflag, size = 0x4, scoped, tag = 'scoped memory for tpu_custom_call.1']
    %10 = vsyncpa [#allocation3], 0
    // Predicated region
    $region2: #{tpu_custom_call.1} parent=1 // pred_check
      _
    $region3: #{tpu_custom_call.1} parent=1 // pred_check_branch
      %12 = sbr.rel (0) target = $region5
    $region4: #{tpu_custom_call.1} parent=1 // pred_region
      _
    $region5: #{tpu_custom_call.1} parent=1 // pred_fallthru
      _
    // Predicated region
    $region6: #{tpu_custom_call.1} parent=1 // pred_check
      _
    $region7: #{tpu_custom_call.1} parent=1 // pred_check_branch
      %14 = sbr.rel (0) target = $region9
    $region8: #{tpu_custom_call.1} parent=1 // pred_region
      _
    $region9: #{tpu_custom_call.1} parent=1 // pred_fallthru
      _
    // Predicated region
    $region10: #{tpu_custom_call.1} parent=1 // pred_check
      _
    $region11: #{tpu_custom_call.1} parent=1 // pred_check_branch
      %16 = sbr.rel (0) target = $region13
    $region12: #{tpu_custom_call.1} parent=1 // pred_region
      _
    $region13: #{tpu_custom_call.1} parent=1 // pred_fallthru
      _
    // Predicated region
    $region14: #{tpu_custom_call.1} parent=1 // pred_check
      _
    $region15: #{tpu_custom_call.1} parent=1 // pred_check_branch
      %18 = sbr.rel (0) target = $region17
    $region16: #{tpu_custom_call.1} parent=1 // pred_region
      _
    $region17: #{tpu_custom_call.1} parent=1 // pred_fallthru
      _
    // Predicated region
    $region18: #{tpu_custom_call.1} parent=1 // pred_check
      _
    $region19: #{tpu_custom_call.1} parent=1 // pred_check_branch
      %20 = sbr.rel (0) target = $region21
    $region20: #{tpu_custom_call.1} parent=1 // pred_region
      _
    $region21: #{tpu_custom_call.1} parent=1 // pred_fallthru
      _
    %v22 = vld [vmem:[%s0] sm:$0xff]
    %v23 = vld [vmem:[%s0 + $0x8] sm:$0xff]
    %v24 = vld [vmem:[%s0 + $0x10] sm:$0xff]
    %v25 = vld [vmem:[%s0 + $0x18] sm:$0xff]
    %v26 = vld [vmem:[%s0 + $0x20] sm:$0xff]
    %v27 = vld [vmem:[%s0 + $0x28] sm:$0xff]
    %v28 = vld [vmem:[%s0 + $0x30] sm:$0xff]
    %v29 = vld [vmem:[%s0 + $0x38] sm:$0xff]
    %v30 = vld [vmem:[%s0 + $0x40] sm:$0xff]
    %v31 = vld [vmem:[%s0 + $0x48] sm:$0xff]
    %v32 = vpack.c.bf16 %v22, %v22
    %v33 = vpack.c.bf16 %v23, %v23
    %v34 = vpack.c.bf16 %v24, %v24
    %v35 = vpack.c.bf16 %v25, %v25
    %v36 = vpack.c.bf16 %v26, %v26
    %v37 = vpack.c.bf16 %v27, %v27
    %v38 = vpack.c.bf16 %v28, %v28
    %v39 = vpack.c.bf16 %v29, %v29
    %v40 = vpack.c.bf16 %v30, %v30
    %v41 = vpack.c.bf16 %v31, %v31
    %v42 = vld [vmem:[%s1] sm:$0xf]
    %v43 = vld [vmem:[%s1 + $0x4] sm:$0xf]
    %v44 = vld [vmem:[%s1 + $0x8] sm:$0xf]
    %v45 = vld [vmem:[%s1 + $0xc] sm:$0xf]
    %v46 = vld [vmem:[%s1 + $0x10] sm:$0xf]
    %v47 = vld [vmem:[%s1 + $0x14] sm:$0xf]
    %v48 = vld [vmem:[%s1 + $0x18] sm:$0xf]
    %v49 = vld [vmem:[%s1 + $0x1c] sm:$0xf]
    %v50 = vld [vmem:[%s1 + $0x20] sm:$0xf]
    %v51 = vld [vmem:[%s1 + $0x24] sm:$0xf]
    %v52 = vld [vmem:[%s1 + $0x28] sm:$0xf]
    %v53 = vld [vmem:[%s1 + $0x2c] sm:$0xf]
    %v54 = vld [vmem:[%s1 + $0x30] sm:$0xf]
    %v55 = vld [vmem:[%s1 + $0x34] sm:$0xf]
    %v56 = vld [vmem:[%s1 + $0x38] sm:$0xf]
    %v57 = vld [vmem:[%s1 + $0x3c] sm:$0xf]
    %v58 = vld [vmem:[%s1 + $0x40] sm:$0xf]
    %v59 = vld [vmem:[%s1 + $0x44] sm:$0xf]
    %v60 = vld [vmem:[%s1 + $0x48] sm:$0xf]
    %v61 = vld [vmem:[%s1 + $0x4c] sm:$0xf]
    %v62 = vld [vmem:[%s1 + $0x50] sm:$0xf]
    %v63 = vld [vmem:[%s1 + $0x54] sm:$0xf]
    %v64 = vld [vmem:[%s1 + $0x58] sm:$0xf]
    %v65 = vld [vmem:[%s1 + $0x5c] sm:$0xf]
    %v66 = vld [vmem:[%s1 + $0x60] sm:$0xf]
    %v67 = vld [vmem:[%s1 + $0x64] sm:$0xf]
    %v68 = vld [vmem:[%s1 + $0x68] sm:$0xf]
    %v69 = vld [vmem:[%s1 + $0x6c] sm:$0xf]
    %v70 = vld [vmem:[%s1 + $0x70] sm:$0xf]
    %v71 = vld [vmem:[%s1 + $0x74] sm:$0xf]
    %v72 = vld [vmem:[%s1 + $0x78] sm:$0xf]
    %v73 = vld [vmem:[%s1 + $0x7c] sm:$0xf]
    %v74 = vld [vmem:[%s1 + $0x80] sm:$0xf]
    %v75 = vld [vmem:[%s1 + $0x84] sm:$0xf]
    %v76 = vld [vmem:[%s1 + $0x88] sm:$0xf]
    %v77 = vld [vmem:[%s1 + $0x8c] sm:$0xf]
    %v78 = vld [vmem:[%s1 + $0x90] sm:$0xf]
    %v79 = vld [vmem:[%s1 + $0x94] sm:$0xf]
    %v80 = vld [vmem:[%s1 + $0x98] sm:$0xf]
    %v81 = vld [vmem:[%s1 + $0x9c] sm:$0xf]
    %v82 = vld [vmem:[%s1 + $0xa0] sm:$0xf]
    %v83 = vld [vmem:[%s1 + $0xa4] sm:$0xf]
    %v84 = vld [vmem:[%s1 + $0xa8] sm:$0xf]
    %v85 = vld [vmem:[%s1 + $0xac] sm:$0xf]
    %v86 = vld [vmem:[%s1 + $0xb0] sm:$0xf]
    %v87 = vld [vmem:[%s1 + $0xb4] sm:$0xf]
    %v88 = vld [vmem:[%s1 + $0xb8] sm:$0xf]
    %v89 = vld [vmem:[%s1 + $0xbc] sm:$0xf]
    %v90 = vld [vmem:[%s1 + $0xc0] sm:$0xf]
    %v91 = vld [vmem:[%s1 + $0xc4] sm:$0xf]
    %v92 = vld [vmem:[%s1 + $0xc8] sm:$0xf]
    %v93 = vld [vmem:[%s1 + $0xcc] sm:$0xf]
    %v94 = vld [vmem:[%s1 + $0xd0] sm:$0xf]
    %v95 = vld [vmem:[%s1 + $0xd4] sm:$0xf]
    %v96 = vld [vmem:[%s1 + $0xd8] sm:$0xf]
    %v97 = vld [vmem:[%s1 + $0xdc] sm:$0xf]
    %v98 = vld [vmem:[%s1 + $0xe0] sm:$0xf]
    %v99 = vld [vmem:[%s1 + $0xe4] sm:$0xf]
    %v100 = vld [vmem:[%s1 + $0xe8] sm:$0xf]
    %v101 = vld [vmem:[%s1 + $0xec] sm:$0xf]
    %v102 = vld [vmem:[%s1 + $0xf0] sm:$0xf]
    %v103 = vld [vmem:[%s1 + $0xf4] sm:$0xf]
    %v104 = vld [vmem:[%s1 + $0xf8] sm:$0xf]
    %v105 = vld [vmem:[%s1 + $0xfc] sm:$0xf]
    %v106 = vld [vmem:[%s1 + $0x100] sm:$0xf]
    %v107 = vld [vmem:[%s1 + $0x104] sm:$0xf]
    %v108 = vld [vmem:[%s1 + $0x108] sm:$0xf]
    %v109 = vld [vmem:[%s1 + $0x10c] sm:$0xf]
    %v110 = vld [vmem:[%s1 + $0x110] sm:$0xf]
    %v111 = vld [vmem:[%s1 + $0x114] sm:$0xf]
    %v112 = vld [vmem:[%s1 + $0x118] sm:$0xf]
    %v113 = vld [vmem:[%s1 + $0x11c] sm:$0xf]
    %v114 = vld [vmem:[%s1 + $0x120] sm:$0xf]
    %v115 = vld [vmem:[%s1 + $0x124] sm:$0xf]
    %v116 = vld [vmem:[%s1 + $0x128] sm:$0xf]
    %v117 = vld [vmem:[%s1 + $0x12c] sm:$0xf]
    %v118 = vld [vmem:[%s1 + $0x130] sm:$0xf]
    %v119 = vld [vmem:[%s1 + $0x134] sm:$0xf]
    %v120 = vld [vmem:[%s1 + $0x138] sm:$0xf]
    %v121 = vld [vmem:[%s1 + $0x13c] sm:$0xf]
    %v122 = vld [vmem:[%s1 + $0x140] sm:$0xf]
    %v123 = vld [vmem:[%s1 + $0x144] sm:$0xf]
    %v124 = vld [vmem:[%s1 + $0x148] sm:$0xf]
    %v125 = vld [vmem:[%s1 + $0x14c] sm:$0xf]
    %v126 = vld [vmem:[%s1 + $0x150] sm:$0xf]
    %v127 = vld [vmem:[%s1 + $0x154] sm:$0xf]
    %v128 = vld [vmem:[%s1 + $0x158] sm:$0xf]
    %v129 = vld [vmem:[%s1 + $0x15c] sm:$0xf]
    %v130 = vld [vmem:[%s1 + $0x160] sm:$0xf]
    %v131 = vld [vmem:[%s1 + $0x164] sm:$0xf]
    %v132 = vld [vmem:[%s1 + $0x168] sm:$0xf]
    %v133 = vld [vmem:[%s1 + $0x16c] sm:$0xf]
    %v134 = vld [vmem:[%s1 + $0x170] sm:$0xf]
    %v135 = vld [vmem:[%s1 + $0x174] sm:$0xf]
    %v136 = vld [vmem:[%s1 + $0x178] sm:$0xf]
    %v137 = vld [vmem:[%s1 + $0x17c] sm:$0xf]
    %v138 = vld [vmem:[%s1 + $0x180] sm:$0xf]
    %v139 = vld [vmem:[%s1 + $0x184] sm:$0xf]
    %v140 = vld [vmem:[%s1 + $0x188] sm:$0xf]
    %v141 = vld [vmem:[%s1 + $0x18c] sm:$0xf]
    %v142 = vld [vmem:[%s1 + $0x190] sm:$0xf]
    %v143 = vld [vmem:[%s1 + $0x194] sm:$0xf]
    %v144 = vld [vmem:[%s1 + $0x198] sm:$0xf]
    %v145 = vld [vmem:[%s1 + $0x19c] sm:$0xf]
    %v146 = vld [vmem:[%s1 + $0x1a0] sm:$0xf]
    %v147 = vld [vmem:[%s1 + $0x1a4] sm:$0xf]
    %v148 = vld [vmem:[%s1 + $0x1a8] sm:$0xf]
    %v149 = vld [vmem:[%s1 + $0x1ac] sm:$0xf]
    %v150 = vld [vmem:[%s1 + $0x1b0] sm:$0xf]
    %v151 = vld [vmem:[%s1 + $0x1b4] sm:$0xf]
    %v152 = vld [vmem:[%s1 + $0x1b8] sm:$0xf]
    %v153 = vld [vmem:[%s1 + $0x1bc] sm:$0xf]
    %v154 = vld [vmem:[%s1 + $0x1c0] sm:$0xf]
    %v155 = vld [vmem:[%s1 + $0x1c4] sm:$0xf]
    %v156 = vld [vmem:[%s1 + $0x1c8] sm:$0xf]
    %v157 = vld [vmem:[%s1 + $0x1cc] sm:$0xf]
    %v158 = vld [vmem:[%s1 + $0x1d0] sm:$0xf]
    %v159 = vld [vmem:[%s1 + $0x1d4] sm:$0xf]
    %v160 = vld [vmem:[%s1 + $0x1d8] sm:$0xf]
    %v161 = vld [vmem:[%s1 + $0x1dc] sm:$0xf]
    %v162 = vld [vmem:[%s1 + $0x1e0] sm:$0xf]
    %v163 = vld [vmem:[%s1 + $0x1e4] sm:$0xf]
    %v164 = vld [vmem:[%s1 + $0x1e8] sm:$0xf]
    %v165 = vld [vmem:[%s1 + $0x1ec] sm:$0xf]
    %v166 = vld [vmem:[%s1 + $0x1f0] sm:$0xf]
    %v167 = vld [vmem:[%s1 + $0x1f4] sm:$0xf]
    %v168 = vld [vmem:[%s1 + $0x1f8] sm:$0xf]
    %v169 = vld [vmem:[%s1 + $0x1fc] sm:$0xf]
    %v170 = vld [vmem:[%s1 + $0x200] sm:$0xf]
    %v171 = vld [vmem:[%s1 + $0x204] sm:$0xf]
    %v172 = vld [vmem:[%s1 + $0x208] sm:$0xf]
    %v173 = vld [vmem:[%s1 + $0x20c] sm:$0xf]
    %v174 = vld [vmem:[%s1 + $0x210] sm:$0xf]
    %v175 = vld [vmem:[%s1 + $0x214] sm:$0xf]
    %v176 = vld [vmem:[%s1 + $0x218] sm:$0xf]
    %v177 = vld [vmem:[%s1 + $0x21c] sm:$0xf]
    %v178 = vld [vmem:[%s1 + $0x220] sm:$0xf]
    %v179 = vld [vmem:[%s1 + $0x224] sm:$0xf]
    %v180 = vld [vmem:[%s1 + $0x228] sm:$0xf]
    %v181 = vld [vmem:[%s1 + $0x22c] sm:$0xf]
    %v182 = vld [vmem:[%s1 + $0x230] sm:$0xf]
    %v183 = vld [vmem:[%s1 + $0x234] sm:$0xf]
    %v184 = vld [vmem:[%s1 + $0x238] sm:$0xf]
    %v185 = vld [vmem:[%s1 + $0x23c] sm:$0xf]
    %v186 = vld [vmem:[%s1 + $0x240] sm:$0xf]
    %v187 = vld [vmem:[%s1 + $0x244] sm:$0xf]
    %v188 = vld [vmem:[%s1 + $0x248] sm:$0xf]
    %v189 = vld [vmem:[%s1 + $0x24c] sm:$0xf]
    %v190 = vld [vmem:[%s1 + $0x250] sm:$0xf]
    %v191 = vld [vmem:[%s1 + $0x254] sm:$0xf]
    %v192 = vld [vmem:[%s1 + $0x258] sm:$0xf]
    %v193 = vld [vmem:[%s1 + $0x25c] sm:$0xf]
    %v194 = vld [vmem:[%s2] sm:$0x1]
    %v196 = vlaneseq
    %v197 = vshrl.u32 %v196, 7
    %v198 = vsub.s32 0, %v197
    %v199 = vrot.slane %v194, %v198
    %v353 = vunpack.c.l.b16 %v42
    %v354 = vunpack.c.l.b16 %v43
    %v355 = vunpack.c.l.b16 %v44
    %v356 = vunpack.c.l.b16 %v45
    %v357 = vunpack.c.l.b16 %v46
    %v358 = vunpack.c.l.b16 %v47
    %v359 = vunpack.c.l.b16 %v48
    %v360 = vunpack.c.l.b16 %v49
    %v361 = vunpack.c.l.b16 %v50
    %v362 = vunpack.c.l.b16 %v51
    %v363 = vunpack.c.l.b16 %v52
    %v364 = vunpack.c.l.b16 %v53
    %v365 = vunpack.c.l.b16 %v54
    %v366 = vunpack.c.l.b16 %v55
    %v367 = vunpack.c.l.b16 %v56
    %v368 = vunpack.c.l.b16 %v57
    %v369 = vunpack.c.l.b16 %v58
    %v370 = vunpack.c.l.b16 %v59
    %v371 = vunpack.c.l.b16 %v60
    %v372 = vunpack.c.l.b16 %v61
    %v373 = vunpack.c.l.b16 %v62
    %v374 = vunpack.c.l.b16 %v63
    %v375 = vunpack.c.l.b16 %v64
    %v376 = vunpack.c.l.b16 %v65
    %v377 = vunpack.c.l.b16 %v66
    %v378 = vunpack.c.l.b16 %v67
    %v379 = vunpack.c.l.b16 %v68
    %v380 = vunpack.c.l.b16 %v69
    %v381 = vunpack.c.l.b16 %v70
    %v382 = vunpack.c.l.b16 %v71
    %v383 = vunpack.c.l.b16 %v72
    %v384 = vunpack.c.l.b16 %v73
    %v385 = vunpack.c.l.b16 %v74
    %v386 = vunpack.c.l.b16 %v75
    %v387 = vunpack.c.l.b16 %v76
    %v388 = vunpack.c.l.b16 %v77
    %v389 = vunpack.c.l.b16 %v78
    %v390 = vunpack.c.l.b16 %v79
    %v391 = vunpack.c.l.b16 %v80
    %v392 = vunpack.c.l.b16 %v81
    %v393 = vunpack.c.l.b16 %v82
    %v394 = vunpack.c.l.b16 %v83
    %v395 = vunpack.c.l.b16 %v84
    %v396 = vunpack.c.l.b16 %v85
    %v397 = vunpack.c.l.b16 %v86
    %v398 = vunpack.c.l.b16 %v87
    %v399 = vunpack.c.l.b16 %v88
    %v400 = vunpack.c.l.b16 %v89
    %v401 = vunpack.c.l.b16 %v90
    %v402 = vunpack.c.l.b16 %v91
    %v403 = vunpack.c.l.b16 %v92
    %v404 = vunpack.c.l.b16 %v93
    %v405 = vunpack.c.l.b16 %v94
    %v406 = vunpack.c.l.b16 %v95
    %v407 = vunpack.c.l.b16 %v96
    %v408 = vunpack.c.l.b16 %v97
    %v409 = vunpack.c.l.b16 %v98
    %v410 = vunpack.c.l.b16 %v99
    %v411 = vunpack.c.l.b16 %v100
    %v412 = vunpack.c.l.b16 %v101
    %v413 = vunpack.c.l.b16 %v102
    %v414 = vunpack.c.l.b16 %v103
    %v415 = vunpack.c.l.b16 %v104
    %v416 = vunpack.c.l.b16 %v105
    %v417 = vunpack.c.l.b16 %v106
    %v418 = vunpack.c.l.b16 %v107
    %v419 = vunpack.c.l.b16 %v108
    %v420 = vunpack.c.l.b16 %v109
    %v421 = vunpack.c.l.b16 %v110
    %v422 = vunpack.c.l.b16 %v111
    %v423 = vunpack.c.l.b16 %v112
    %v424 = vunpack.c.l.b16 %v113
    %v425 = vunpack.c.l.b16 %v114
    %v426 = vunpack.c.l.b16 %v115
    %v427 = vunpack.c.l.b16 %v116
    %v428 = vunpack.c.l.b16 %v117
    %v429 = vunpack.c.l.b16 %v118
    %v430 = vunpack.c.l.b16 %v119
    %v431 = vunpack.c.l.b16 %v120
    %v432 = vunpack.c.l.b16 %v121
    %v433 = vunpack.c.l.b16 %v122
    %v434 = vunpack.c.l.b16 %v123
    %v435 = vunpack.c.l.b16 %v124
    %v436 = vunpack.c.l.b16 %v125
    %v437 = vunpack.c.l.b16 %v126
    %v438 = vunpack.c.l.b16 %v127
    %v439 = vunpack.c.l.b16 %v128
    %v440 = vunpack.c.l.b16 %v129
    %v441 = vunpack.c.l.b16 %v130
    %v442 = vunpack.c.l.b16 %v131
    %v443 = vunpack.c.l.b16 %v132
    %v444 = vunpack.c.l.b16 %v133
    %v445 = vunpack.c.l.b16 %v134
    %v446 = vunpack.c.l.b16 %v135
    %v447 = vunpack.c.l.b16 %v136
    %v448 = vunpack.c.l.b16 %v137
    %v449 = vunpack.c.l.b16 %v138
    %v450 = vunpack.c.l.b16 %v139
    %v451 = vunpack.c.l.b16 %v140
    %v452 = vunpack.c.l.b16 %v141
    %v453 = vunpack.c.l.b16 %v142
    %v454 = vunpack.c.l.b16 %v143
    %v455 = vunpack.c.l.b16 %v144
    %v456 = vunpack.c.l.b16 %v145
    %v457 = vunpack.c.l.b16 %v146
    %v458 = vunpack.c.l.b16 %v147
    %v459 = vunpack.c.l.b16 %v148
    %v460 = vunpack.c.l.b16 %v149
    %v461 = vunpack.c.l.b16 %v150
    %v462 = vunpack.c.l.b16 %v151
    %v463 = vunpack.c.l.b16 %v152
    %v464 = vunpack.c.l.b16 %v153
    %v465 = vunpack.c.l.b16 %v154
    %v466 = vunpack.c.l.b16 %v155
    %v467 = vunpack.c.l.b16 %v156
    %v468 = vunpack.c.l.b16 %v157
    %v469 = vunpack.c.l.b16 %v158
    %v470 = vunpack.c.l.b16 %v159
    %v471 = vunpack.c.l.b16 %v160
    %v472 = vunpack.c.l.b16 %v161
    %v473 = vunpack.c.l.b16 %v162
    %v474 = vunpack.c.l.b16 %v163
    %v475 = vunpack.c.l.b16 %v164
    %v476 = vunpack.c.l.b16 %v165
    %v477 = vunpack.c.l.b16 %v166
    %v478 = vunpack.c.l.b16 %v167
    %v479 = vunpack.c.l.b16 %v168
    %v480 = vunpack.c.l.b16 %v169
    %v481 = vunpack.c.l.b16 %v170
    %v482 = vunpack.c.l.b16 %v171
    %v483 = vunpack.c.l.b16 %v172
    %v484 = vunpack.c.l.b16 %v173
    %v485 = vunpack.c.l.b16 %v174
    %v486 = vunpack.c.l.b16 %v175
    %v487 = vunpack.c.l.b16 %v176
    %v488 = vunpack.c.l.b16 %v177
    %v489 = vunpack.c.l.b16 %v178
    %v490 = vunpack.c.l.b16 %v179
    %v491 = vunpack.c.l.b16 %v180
    %v492 = vunpack.c.l.b16 %v181
    %v493 = vunpack.c.l.b16 %v182
    %v494 = vunpack.c.l.b16 %v183
    %v495 = vunpack.c.l.b16 %v184
    %v496 = vunpack.c.l.b16 %v185
    %v497 = vunpack.c.l.b16 %v186
    %v498 = vunpack.c.l.b16 %v187
    %v499 = vunpack.c.l.b16 %v188
    %v500 = vunpack.c.l.b16 %v189
    %v501 = vunpack.c.l.b16 %v190
    %v502 = vunpack.c.l.b16 %v191
    %v503 = vunpack.c.l.b16 %v192
    %v504 = vunpack.c.l.b16 %v193
    %v505 = vpack.c.b16 %v354, %v353
    %v506 = vpack.c.b16 %v356, %v355
    %v507 = vpack.c.b16 %v358, %v357
    %v508 = vpack.c.b16 %v360, %v359
    %v509 = vpack.c.b16 %v362, %v361
    %v510 = vpack.c.b16 %v364, %v363
    %v511 = vpack.c.b16 %v366, %v365
    %v512 = vpack.c.b16 %v368, %v367
    %v513 = vpack.c.b16 %v370, %v369
    %v514 = vpack.c.b16 %v372, %v371
    %v515 = vpack.c.b16 %v374, %v373
    %v516 = vpack.c.b16 %v376, %v375
    %v517 = vpack.c.b16 %v378, %v377
    %v518 = vpack.c.b16 %v380, %v379
    %v519 = vpack.c.b16 %v382, %v381
    %v520 = vpack.c.b16 %v384, %v383
    %v521 = vpack.c.b16 %v386, %v385
    %v522 = vpack.c.b16 %v388, %v387
    %v523 = vpack.c.b16 %v390, %v389
    %v524 = vpack.c.b16 %v392, %v391
    %v525 = vpack.c.b16 %v394, %v393
    %v526 = vpack.c.b16 %v396, %v395
    %v527 = vpack.c.b16 %v398, %v397
    %v528 = vpack.c.b16 %v400, %v399
    %v529 = vpack.c.b16 %v402, %v401
    %v530 = vpack.c.b16 %v404, %v403
    %v531 = vpack.c.b16 %v406, %v405
    %v532 = vpack.c.b16 %v408, %v407
    %v533 = vpack.c.b16 %v410, %v409
    %v534 = vpack.c.b16 %v412, %v411
    %v535 = vpack.c.b16 %v414, %v413
    %v536 = vpack.c.b16 %v416, %v415
    %v537 = vpack.c.b16 %v418, %v417
    %v538 = vpack.c.b16 %v420, %v419
    %v539 = vpack.c.b16 %v422, %v421
    %v540 = vpack.c.b16 %v424, %v423
    %v541 = vpack.c.b16 %v426, %v425
    %v542 = vpack.c.b16 %v428, %v427
    %v543 = vpack.c.b16 %v430, %v429
    %v544 = vpack.c.b16 %v432, %v431
    %v545 = vpack.c.b16 %v434, %v433
    %v546 = vpack.c.b16 %v436, %v435
    %v547 = vpack.c.b16 %v438, %v437
    %v548 = vpack.c.b16 %v440, %v439
    %v549 = vpack.c.b16 %v442, %v441
    %v550 = vpack.c.b16 %v444, %v443
    %v551 = vpack.c.b16 %v446, %v445
    %v552 = vpack.c.b16 %v448, %v447
    %v553 = vpack.c.b16 %v450, %v449
    %v554 = vpack.c.b16 %v452, %v451
    %v555 = vpack.c.b16 %v454, %v453
    %v556 = vpack.c.b16 %v456, %v455
    %v557 = vpack.c.b16 %v458, %v457
    %v558 = vpack.c.b16 %v460, %v459
    %v559 = vpack.c.b16 %v462, %v461
    %v560 = vpack.c.b16 %v464, %v463
    %v561 = vpack.c.b16 %v466, %v465
    %v562 = vpack.c.b16 %v468, %v467
    %v563 = vpack.c.b16 %v470, %v469
    %v564 = vpack.c.b16 %v472, %v471
    %v565 = vpack.c.b16 %v474, %v473
    %v566 = vpack.c.b16 %v476, %v475
    %v567 = vpack.c.b16 %v478, %v477
    %v568 = vpack.c.b16 %v480, %v479
    %v569 = vpack.c.b16 %v482, %v481
    %v570 = vpack.c.b16 %v484, %v483
    %v571 = vpack.c.b16 %v486, %v485
    %v572 = vpack.c.b16 %v488, %v487
    %v573 = vpack.c.b16 %v490, %v489
    %v574 = vpack.c.b16 %v492, %v491
    %v575 = vpack.c.b16 %v494, %v493
    %v576 = vpack.c.b16 %v496, %v495
    %v577 = vpack.c.b16 %v498, %v497
    %v578 = vpack.c.b16 %v500, %v499
    %v579 = vpack.c.b16 %v502, %v501
    %v580 = vpack.c.b16 %v504, %v503
    %vm657 = vcmask 523264
    %v659 = vsel %vm657, %v41, 0
    %661 = vmatprep.subr.bf16.mxu0 0
    %662 = vmatpush1.bf16.msra.mxu0 %v505
    %663 = vmatprep.subr.bf16.mxu0 0
    %664 = vmatpush1.bf16.msra.mxu0 %v506
    %665 = vmatprep.subr.bf16.mxu0 0
    %666 = vmatpush1.bf16.msra.mxu0 %v507
    %667 = vmatprep.subr.bf16.mxu0 0
    %668 = vmatpush1.bf16.msra.mxu0 %v508
    %669 = vmatprep.subr.bf16.mxu0 0
    %670 = vmatpush1.bf16.msra.mxu0 %v509
    %671 = vmatprep.subr.bf16.mxu0 0
    %672 = vmatpush1.bf16.msra.mxu0 %v510
    %673 = vmatprep.subr.bf16.mxu0 0
    %674 = vmatpush1.bf16.msra.mxu0 %v511
    %675 = vmatprep.subr.bf16.mxu0 0
    %676 = vmatpush1.bf16.msra.mxu0 %v512
    %677 = vmatprep.subr.bf16.mxu0 0
    %678 = vmatpush1.bf16.msra.mxu0 %v513
    %679 = vmatprep.subr.bf16.mxu0 0
    %680 = vmatpush1.bf16.msra.mxu0 %v514
    %681 = vmatprep.subr.bf16.mxu0 0
    %682 = vmatpush1.bf16.msra.mxu0 %v515
    %683 = vmatprep.subr.bf16.mxu0 0
    %684 = vmatpush1.bf16.msra.mxu0 %v516
    %685 = vmatprep.subr.bf16.mxu0 0
    %686 = vmatpush1.bf16.msra.mxu0 %v517
    %687 = vmatprep.subr.bf16.mxu0 0
    %688 = vmatpush1.bf16.msra.mxu0 %v518
    %689 = vmatprep.subr.bf16.mxu0 0
    %690 = vmatpush1.bf16.msra.mxu0 %v519
    %691 = vmatprep.subr.bf16.mxu0 0
    %692 = vmatpush1.bf16.msra.mxu0 %v520
    %693 = vmatprep.mubr.bf16.mxu0 %v33
    %694 = vmatmul.mubr.bf16.gmra.mrb[0].mxu0 %v32
    %v695 = vpop.f32.mrb[0].mxu0
    %v696 = vadd.f32 %v199, %v695
    %v697 = vpop.f32.mrb[0].mxu0
    %v698 = vpop.f32.mrb[0].mxu0
    %v699 = vpop.f32.mrb[0].mxu0
    %700 = vdwg.mxu0
    %701 = vmatprep.subr.bf16.mxu0 0
    %702 = vmatpush1.bf16.msra.mxu0 %v521
    %703 = vmatprep.subr.bf16.mxu0 0
    %704 = vmatpush1.bf16.msra.mxu0 %v522
    %705 = vmatprep.subr.bf16.mxu0 0
    %706 = vmatpush1.bf16.msra.mxu0 %v523
    %707 = vmatprep.subr.bf16.mxu0 0
    %708 = vmatpush1.bf16.msra.mxu0 %v524
    %709 = vmatprep.subr.bf16.mxu0 0
    %710 = vmatpush1.bf16.msra.mxu0 %v525
    %711 = vmatprep.subr.bf16.mxu0 0
    %712 = vmatpush1.bf16.msra.mxu0 %v526
    %713 = vmatprep.subr.bf16.mxu0 0
    %714 = vmatpush1.bf16.msra.mxu0 %v527
    %715 = vmatprep.subr.bf16.mxu0 0
    %716 = vmatpush1.bf16.msra.mxu0 %v528
    %717 = vmatprep.subr.bf16.mxu0 0
    %718 = vmatpush1.bf16.msra.mxu0 %v529
    %719 = vmatprep.subr.bf16.mxu0 0
    %720 = vmatpush1.bf16.msra.mxu0 %v530
    %721 = vmatprep.subr.bf16.mxu0 0
    %722 = vmatpush1.bf16.msra.mxu0 %v531
    %723 = vmatprep.subr.bf16.mxu0 0
    %724 = vmatpush1.bf16.msra.mxu0 %v532
    %725 = vmatprep.subr.bf16.mxu0 0
    %726 = vmatpush1.bf16.msra.mxu0 %v533
    %727 = vmatprep.subr.bf16.mxu0 0
    %728 = vmatpush1.bf16.msra.mxu0 %v534
    %729 = vmatprep.subr.bf16.mxu0 0
    %730 = vmatpush1.bf16.msra.mxu0 %v535
    %731 = vmatprep.subr.bf16.mxu0 0
    %732 = vmatpush1.bf16.msra.mxu0 %v536
    %733 = vmatprep.mubr.bf16.mxu0 %v35
    %734 = vmatmul.mubr.bf16.gmra.mrb[0].mxu0 %v34
    %v735 = vpop.f32.mrb[0].mxu0
    %v736 = vadd.f32 %v696, %v735
    %v737 = vpop.f32.mrb[0].mxu0
    %v738 = vpop.f32.mrb[0].mxu0
    %v739 = vpop.f32.mrb[0].mxu0
    %740 = vdwg.mxu0
    %741 = vmatprep.subr.bf16.mxu0 0
    %742 = vmatpush1.bf16.msra.mxu0 %v537
    %743 = vmatprep.subr.bf16.mxu0 0
    %744 = vmatpush1.bf16.msra.mxu0 %v538
    %745 = vmatprep.subr.bf16.mxu0 0
    %746 = vmatpush1.bf16.msra.mxu0 %v539
    %747 = vmatprep.subr.bf16.mxu0 0
    %748 = vmatpush1.bf16.msra.mxu0 %v540
    %749 = vmatprep.subr.bf16.mxu0 0
    %750 = vmatpush1.bf16.msra.mxu0 %v541
    %751 = vmatprep.subr.bf16.mxu0 0
    %752 = vmatpush1.bf16.msra.mxu0 %v542
    %753 = vmatprep.subr.bf16.mxu0 0
    %754 = vmatpush1.bf16.msra.mxu0 %v543
    %755 = vmatprep.subr.bf16.mxu0 0
    %756 = vmatpush1.bf16.msra.mxu0 %v544
    %757 = vmatprep.subr.bf16.mxu0 0
    %758 = vmatpush1.bf16.msra.mxu0 %v545
    %759 = vmatprep.subr.bf16.mxu0 0
    %760 = vmatpush1.bf16.msra.mxu0 %v546
    %761 = vmatprep.subr.bf16.mxu0 0
    %762 = vmatpush1.bf16.msra.mxu0 %v547
    %763 = vmatprep.subr.bf16.mxu0 0
    %764 = vmatpush1.bf16.msra.mxu0 %v548
    %765 = vmatprep.subr.bf16.mxu0 0
    %766 = vmatpush1.bf16.msra.mxu0 %v549
    %767 = vmatprep.subr.bf16.mxu0 0
    %768 = vmatpush1.bf16.msra.mxu0 %v550
    %769 = vmatprep.subr.bf16.mxu0 0
    %770 = vmatpush1.bf16.msra.mxu0 %v551
    %771 = vmatprep.subr.bf16.mxu0 0
    %772 = vmatpush1.bf16.msra.mxu0 %v552
    %773 = vmatprep.mubr.bf16.mxu0 %v37
    %774 = vmatmul.mubr.bf16.gmra.mrb[0].mxu0 %v36
    %v775 = vpop.f32.mrb[0].mxu0
    %v776 = vadd.f32 %v736, %v775
    %v777 = vpop.f32.mrb[0].mxu0
    %v778 = vpop.f32.mrb[0].mxu0
    %v779 = vpop.f32.mrb[0].mxu0
    %780 = vdwg.mxu0
    %781 = vmatprep.subr.bf16.mxu0 0
    %782 = vmatpush1.bf16.msra.mxu0 %v553
    %783 = vmatprep.subr.bf16.mxu0 0
    %784 = vmatpush1.bf16.msra.mxu0 %v554
    %785 = vmatprep.subr.bf16.mxu0 0
    %786 = vmatpush1.bf16.msra.mxu0 %v555
    %787 = vmatprep.subr.bf16.mxu0 0
    %788 = vmatpush1.bf16.msra.mxu0 %v556
    %789 = vmatprep.subr.bf16.mxu0 0
    %790 = vmatpush1.bf16.msra.mxu0 %v557
    %791 = vmatprep.subr.bf16.mxu0 0
    %792 = vmatpush1.bf16.msra.mxu0 %v558
    %793 = vmatprep.subr.bf16.mxu0 0
    %794 = vmatpush1.bf16.msra.mxu0 %v559
    %795 = vmatprep.subr.bf16.mxu0 0
    %796 = vmatpush1.bf16.msra.mxu0 %v560
    %797 = vmatprep.subr.bf16.mxu0 0
    %798 = vmatpush1.bf16.msra.mxu0 %v561
    %799 = vmatprep.subr.bf16.mxu0 0
    %800 = vmatpush1.bf16.msra.mxu0 %v562
    %801 = vmatprep.subr.bf16.mxu0 0
    %802 = vmatpush1.bf16.msra.mxu0 %v563
    %803 = vmatprep.subr.bf16.mxu0 0
    %804 = vmatpush1.bf16.msra.mxu0 %v564
    %805 = vmatprep.subr.bf16.mxu0 0
    %806 = vmatpush1.bf16.msra.mxu0 %v565
    %807 = vmatprep.subr.bf16.mxu0 0
    %808 = vmatpush1.bf16.msra.mxu0 %v566
    %809 = vmatprep.subr.bf16.mxu0 0
    %810 = vmatpush1.bf16.msra.mxu0 %v567
    %811 = vmatprep.subr.bf16.mxu0 0
    %812 = vmatpush1.bf16.msra.mxu0 %v568
    %813 = vmatprep.mubr.bf16.mxu0 %v39
    %814 = vmatmul.mubr.bf16.gmra.mrb[0].mxu0 %v38
    %v815 = vpop.f32.mrb[0].mxu0
    %v816 = vadd.f32 %v776, %v815
    %v817 = vpop.f32.mrb[0].mxu0
    %v818 = vpop.f32.mrb[0].mxu0
    %v819 = vpop.f32.mrb[0].mxu0
    %820 = vdwg.mxu0
    %821 = vmatprep.subr.bf16.mxu0 0
    %822 = vmatpush1.bf16.msra.mxu0 %v569
    %823 = vmatprep.subr.bf16.mxu0 0
    %824 = vmatpush1.bf16.msra.mxu0 %v570
    %825 = vmatprep.subr.bf16.mxu0 0
    %826 = vmatpush1.bf16.msra.mxu0 %v571
    %827 = vmatprep.subr.bf16.mxu0 0
    %828 = vmatpush1.bf16.msra.mxu0 %v572
    %829 = vmatprep.subr.bf16.mxu0 0
    %830 = vmatpush1.bf16.msra.mxu0 %v573
    %831 = vmatprep.subr.bf16.mxu0 0
    %832 = vmatpush1.bf16.msra.mxu0 %v574
    %833 = vmatprep.subr.bf16.mxu0 0
    %834 = vmatpush1.bf16.msra.mxu0 %v575
    %835 = vmatprep.subr.bf16.mxu0 0
    %836 = vmatpush1.bf16.msra.mxu0 %v576
    %837 = vmatprep.subr.bf16.mxu0 0
    %838 = vmatpush1.bf16.msra.mxu0 %v577
    %839 = vmatprep.subr.bf16.mxu0 0
    %840 = vmatpush1.bf16.msra.mxu0 %v578
    %841 = vmatprep.subr.bf16.mxu0 0
    %842 = vmatpush1.bf16.msra.mxu0 %v579
    %843 = vmatprep.subr.bf16.mxu0 0
    %844 = vmatpush1.bf16.msra.mxu0 %v580
    %845 = vmatprep.subr.bf16.mxu0 0
    %846 = vmatpush1.bf16.msra.mxu0 0
    %847 = vmatprep.subr.bf16.mxu0 0
    %848 = vmatpush1.bf16.msra.mxu0 0
    %849 = vmatprep.subr.bf16.mxu0 0
    %850 = vmatpush1.bf16.msra.mxu0 0
    %851 = vmatprep.subr.bf16.mxu0 0
    %852 = vmatpush1.bf16.msra.mxu0 0
    %853 = vmatprep.mubr.bf16.mxu0 %v659
    %854 = vmatmul.mubr.bf16.gmra.mrb[0].mxu0 %v40
    %v855 = vpop.f32.mrb[0].mxu0
    %v856 = vadd.f32 %v816, %v855
    %v857 = vpop.f32.mrb[0].mxu0
    %v858 = vpop.f32.mrb[0].mxu0
    %v859 = vpop.f32.mrb[0].mxu0
    %860 = vdwg.mxu0
    %v861 = vmax.f32 %v856, 0.0
    %v862 = vpack.c.bf16 %v861, %v861
    %v863 = vld [vmem:[%s3] sm:$0xf]
    %v864 = vld [vmem:[%s3 + $0x4] sm:$0xf]
    %v865 = vld [vmem:[%s3 + $0x8] sm:$0xf]
    %v866 = vld [vmem:[%s3 + $0xc] sm:$0xf]
    %v867 = vld [vmem:[%s3 + $0x10] sm:$0xf]
    %v868 = vld [vmem:[%s3 + $0x14] sm:$0xf]
    %v869 = vld [vmem:[%s3 + $0x18] sm:$0xf]
    %v870 = vld [vmem:[%s3 + $0x1c] sm:$0xf]
    %v871 = vld [vmem:[%s4] sm:$0x1]
    %v873 = vlaneseq
    %v874 = vshrl.u32 %v873, 7
    %v875 = vsub.s32 0, %v874
    %v876 = vrot.slane %v871, %v875
    %v886 = vunpack.c.l.b16 %v863
    %v887 = vunpack.c.l.b16 %v864
    %v888 = vunpack.c.l.b16 %v865
    %v889 = vunpack.c.l.b16 %v866
    %v890 = vunpack.c.l.b16 %v867
    %v891 = vunpack.c.l.b16 %v868
    %v892 = vunpack.c.l.b16 %v869
    %v893 = vunpack.c.l.b16 %v870
    %v894 = vpack.c.b16 %v887, %v886
    %v895 = vpack.c.b16 %v889, %v888
    %v896 = vpack.c.b16 %v891, %v890
    %v897 = vpack.c.b16 %v893, %v892
    %v903 = vsel %vm657, %v862, 0
    %905 = vmatprep.subr.bf16.mxu0 0
    %906 = vmatpush1.bf16.msra.mxu0 %v894
    %907 = vmatprep.subr.bf16.mxu0 0
    %908 = vmatpush1.bf16.msra.mxu0 %v895
    %909 = vmatprep.subr.bf16.mxu0 0
    %910 = vmatpush1.bf16.msra.mxu0 %v896
    %911 = vmatprep.subr.bf16.mxu0 0
    %912 = vmatpush1.bf16.msra.mxu0 %v897
    %913 = vmatprep.subr.bf16.mxu0 0
    %914 = vmatpush1.bf16.msra.mxu0 0
    %915 = vmatprep.subr.bf16.mxu0 0
    %916 = vmatpush1.bf16.msra.mxu0 0
    %917 = vmatprep.subr.bf16.mxu0 0
    %918 = vmatpush1.bf16.msra.mxu0 0
    %919 = vmatprep.subr.bf16.mxu0 0
    %920 = vmatpush1.bf16.msra.mxu0 0
    %921 = vmatprep.subr.bf16.mxu0 0
    %922 = vmatpush1.bf16.msra.mxu0 0
    %923 = vmatprep.subr.bf16.mxu0 0
    %924 = vmatpush1.bf16.msra.mxu0 0
    %925 = vmatprep.subr.bf16.mxu0 0
    %926 = vmatpush1.bf16.msra.mxu0 0
    %927 = vmatprep.subr.bf16.mxu0 0
    %928 = vmatpush1.bf16.msra.mxu0 0
    %929 = vmatprep.subr.bf16.mxu0 0
    %930 = vmatpush1.bf16.msra.mxu0 0
    %931 = vmatprep.subr.bf16.mxu0 0
    %932 = vmatpush1.bf16.msra.mxu0 0
    %933 = vmatprep.subr.bf16.mxu0 0
    %934 = vmatpush1.bf16.msra.mxu0 0
    %935 = vmatprep.subr.bf16.mxu0 0
    %936 = vmatpush1.bf16.msra.mxu0 0
    %937 = vmatprep.mubr.bf16.mxu0 0
    %938 = vmatmul.mubr.bf16.gmra.mrb[0].mxu0 %v903
    %v939 = vpop.f32.mrb[0].mxu0
    %v940 = vadd.f32 %v876, %v939
    %v941 = vpop.f32.mrb[0].mxu0
    %v942 = vpop.f32.mrb[0].mxu0
    %v943 = vpop.f32.mrb[0].mxu0
    %944 = vdwg.mxu0
    %v945 = vpack.c.bf16 %v940, %v940
    %946 = vst [vmem:[#allocation2] sm:$0xf] %v945
    // Predicated region
    $region22: #{tpu_custom_call.1} parent=1 // pred_check
      _
    $region23: #{tpu_custom_call.1} parent=1 // pred_check_branch
      %948 = sbr.rel (0) target = $region25
    $region24: #{tpu_custom_call.1} parent=1 // pred_region
      %s950 = ssub.s32 64, 64
      %951 = vsyncadd [#allocation3], %s950
      %s953 = sshll.u32 [#allocation2], 4
      %s954 = int_to_ptr.vmem [resolvable:$true] %s953
      %956 = dma.vmem_to_hbm [thread:$0]  %s954, 64, %s5, [#allocation3]
    $region25: #{tpu_custom_call.1} parent=1 // pred_fallthru
      _
    // Predicated region
    $region26: #{tpu_custom_call.1} parent=1 // pred_check
      _
    $region27: #{tpu_custom_call.1} parent=1 // pred_check_branch
      %958 = sbr.rel (0) target = $region29
    $region28: #{tpu_custom_call.1} parent=1 // pred_region
      %959 = dma.done [#allocation3], 64
    $region29: #{tpu_custom_call.1} parent=1 // pred_fallthru
      _
    %960 = vsyncpa [#allocation3], 1

</llo_original>
